<compile_context>
chip_gen: v5e
topology: v5e:2x2
jax: 0.10.0
libtpu: 0.0.40
codegen_flags: <defaults>
</compile_context>

<pallas_src>
from functools import partial

import jax
import jax.numpy as jnp
from jax.experimental import pallas as pl
from jax.experimental.pallas import tpu as pltpu


# ----------------------------------------------------------------------------
# Pallas kernel: one grid step == the whole flattened document batch
# ----------------------------------------------------------------------------
def docnet_kernel(a_ref, x_ref, p_ref,
                  w1_ref, b1_ref, w2_ref, b2_ref, wr_ref, br_ref,
                  out_ref):
    a = a_ref[...]           # [DN, DN] bf16 block-diag row-normalized adjacency
    h = x_ref[...]           # [DN, F]  bf16 node features

    # --- GRAPHLayer step 1: H = ReLU(A @ H @ W1 + b1) ---
    ah = jnp.dot(a, h, preferred_element_type=jnp.float32)
    h = jnp.dot(ah.astype(jnp.bfloat16), w1_ref[...],
                preferred_element_type=jnp.float32) + b1_ref[...]
    h = jnp.maximum(h, 0.0).astype(jnp.bfloat16)

    # --- GRAPHLayer step 2: H = ReLU(A @ H @ W2 + b2) ---
    ah = jnp.dot(a, h, preferred_element_type=jnp.float32)
    h = jnp.dot(ah.astype(jnp.bfloat16), w2_ref[...],
                preferred_element_type=jnp.float32) + b2_ref[...]
    h = jnp.maximum(h, 0.0).astype(jnp.bfloat16)

    # --- READOUTLayer: per-graph mean pool, then linear classifier ---
    pooled = jnp.dot(p_ref[...], h, preferred_element_type=jnp.float32)  # [DG, H]
    out_ref[...] = (jnp.dot(pooled.astype(jnp.bfloat16), wr_ref[...],
                            preferred_element_type=jnp.float32)
                    + br_ref[...])                                        # [DG, 128]


def docnet_forward(a_bd, x_flat, p_bd, w1, b1, w2, b2, wr_pad, br_pad, out_dim):
    """Fused forward on the flattened batch. Returns (logits[DG, out_dim], kl[1])."""
    DN = a_bd.shape[0]
    F = x_flat.shape[-1]
    DG = p_bd.shape[0]
    H = w1.shape[1]
    OUT_PAD = wr_pad.shape[1]

    # Full-array blocks, single grid step (all data fits easily in VMEM).
    const = lambda shape: pl.BlockSpec(shape, lambda i: tuple(0 for _ in shape))

    logits_pad = pl.pallas_call(
        docnet_kernel,
        out_shape=jax.ShapeDtypeStruct((DG, OUT_PAD), jnp.float32),
        grid=(1,),
        in_specs=[
            const((DN, DN)),        # block-diag A_hat
            const((DN, F)),         # X (flattened node features)
            const((DG, DN)),        # block-diag mean-pool matrix
            const((F, H)),          # W1
            const((1, H)),          # b1
            const((H, H)),          # W2
            const((1, H)),          # b2
            const((H, OUT_PAD)),    # Wr (padded to lane-dense 128)
            const((1, OUT_PAD)),    # br (padded)
        ],
        out_specs=const((DG, OUT_PAD)),
        compiler_params=pltpu.CompilerParams(
            dimension_semantics=("arbitrary",),   # single step; no TC sharding
            vmem_limit_bytes=4 * 1024 * 1024,     # true footprint is ~0.2 MiB
        ),
    )(a_bd, x_flat, p_bd, w1, b1, w2, b2, wr_pad, br_pad)

    logits = logits_pad[:, :out_dim]
    kl_term = jnp.zeros((1,), jnp.float32)        # 'reg' not in func
    return logits, kl_term


# ----------------------------------------------------------------------------
# Pure-JAX reference (same bf16 rounding as the kernel) for a sanity check
# ----------------------------------------------------------------------------
def reference_forward(a_bd, x_flat, p_bd, w1, b1, w2, b2, wr_pad, br_pad):
    ah = jnp.dot(a_bd, x_flat, preferred_element_type=jnp.float32)
    h = jnp.dot(ah.astype(jnp.bfloat16), w1,
                preferred_element_type=jnp.float32) + b1
    h = jnp.maximum(h, 0.0).astype(jnp.bfloat16)
    ah = jnp.dot(a_bd, h, preferred_element_type=jnp.float32)
    h = jnp.dot(ah.astype(jnp.bfloat16), w2,
                preferred_element_type=jnp.float32) + b2
    h = jnp.maximum(h, 0.0).astype(jnp.bfloat16)
    pooled = jnp.dot(p_bd, h, preferred_element_type=jnp.float32)
    return jnp.dot(pooled.astype(jnp.bfloat16), wr_pad,
                   preferred_element_type=jnp.float32) + br_pad


# ----------------------------------------------------------------------------
# Glue: per-document graph construction + block-diagonal flattening (plain JAX)
# ----------------------------------------------------------------------------
def build_doc_graph(key, graphs_per_doc, nodes_per_graph, edges_per_graph):
    """Dense row-normalized adjacency (self loops set, not added) + pool matrix."""
    n = graphs_per_doc * nodes_per_graph
    k1, k2 = jax.random.split(key)
    src = jax.random.randint(k1, (graphs_per_doc, edges_per_graph), 0, nodes_per_graph)
    dst = jax.random.randint(k2, (graphs_per_doc, edges_per_graph), 0, nodes_per_graph)
    off = (jnp.arange(graphs_per_doc) * nodes_per_graph)[:, None]
    src = (src + off).reshape(-1)
    dst = (dst + off).reshape(-1)

    adj = jnp.zeros((n, n), jnp.float32).at[dst, src].set(1.0)   # src -> dst
    diag = jnp.arange(n)
    adj = adj.at[diag, diag].set(1.0)     # self loops (set, so no 2.0 duplicates)
    deg = jnp.sum(adj, axis=1, keepdims=True)
    a_hat = adj / jnp.maximum(deg, 1.0)

    batch = jnp.repeat(jnp.arange(graphs_per_doc), nodes_per_graph)
    one_hot = jax.nn.one_hot(batch, graphs_per_doc, dtype=jnp.float32).T   # [G, N]
    counts = jnp.sum(one_hot, axis=1, keepdims=True)
    pool = one_hot / jnp.maximum(counts, 1.0)
    return a_hat, pool


def block_diagonal(blocks):
    """Stack [D, R, C] blocks into a dense block-diagonal [D*R, D*C] matrix."""
    D, R, C = blocks.shape
    out = jnp.zeros((D * R, D * C), blocks.dtype)
    for d in range(D):                     # static, D is tiny
        out = out.at[d * R:(d + 1) * R, d * C:(d + 1) * C].set(blocks[d])
    return out


def glorot(key, shape):
    limit = (6.0 / (shape[0] + shape[1])) ** 0.5
    return jax.random.uniform(key, shape, jnp.float32, -limit, limit)


if __name__ == "__main__":
    # params: input_dim=32, hidden_dim=32, output_dim=8, num_layer=2,
    #         aggregate='mean', dropout=0 (eval), methods='gnn_note'
    INPUT_DIM, HIDDEN_DIM, OUTPUT_DIM = 32, 32, 8
    OUT_PAD = 128                                   # lane-dense output slab
    D_DOCS, GRAPHS_PER_DOC, NODES_PER_GRAPH, EDGES_PER_GRAPH = 8, 2, 8, 20
    N = GRAPHS_PER_DOC * NODES_PER_GRAPH            # 16 nodes per document
    DN = D_DOCS * N                                 # 128 flattened nodes
    DG = D_DOCS * GRAPHS_PER_DOC                    # 16 graphs total

    key = jax.random.PRNGKey(0)
    k_x, k_g, k_w1, k_w2, k_wr = jax.random.split(key, 5)

    # node features (data.x_n) per document
    x = jax.random.normal(k_x, (D_DOCS, N, INPUT_DIM), jnp.float32)

    # per-document adjacency blocks + mean-pool matrices (data.edge_index_n /
    # data.x_n_batch equivalents)
    doc_keys = jax.random.split(k_g, D_DOCS)
    build = partial(build_doc_graph, graphs_per_doc=GRAPHS_PER_DOC,
                    nodes_per_graph=NODES_PER_GRAPH,
                    edges_per_graph=EDGES_PER_GRAPH)
    a_hat, pool = jax.vmap(build)(doc_keys)         # [D,N,N], [D,G,N]

    # flatten the document batch into one block-diagonal propagation problem
    a_bd = block_diagonal(a_hat)                    # [DN, DN] = [128, 128]
    p_bd = block_diagonal(pool)                     # [DG, DN] = [16, 128]
    x_flat = x.reshape(DN, INPUT_DIM)               # [128, 32]

    # deterministic parameters (GRAPHLayer: 2 GCN steps; READOUTLayer: linear)
    w1 = glorot(k_w1, (INPUT_DIM, HIDDEN_DIM))
    b1 = jnp.zeros((1, HIDDEN_DIM), jnp.float32)
    w2 = glorot(k_w2, (HIDDEN_DIM, HIDDEN_DIM))
    b2 = jnp.zeros((1, HIDDEN_DIM), jnp.float32)
    wr = glorot(k_wr, (HIDDEN_DIM, OUTPUT_DIM))
    br = jnp.zeros((1, OUTPUT_DIM), jnp.float32)

    # lane-dense classifier: pad out_dim 8 -> 128 with zero columns
    wr_pad = jnp.zeros((HIDDEN_DIM, OUT_PAD), jnp.float32).at[:, :OUTPUT_DIM].set(wr)
    br_pad = jnp.zeros((1, OUT_PAD), jnp.float32).at[:, :OUTPUT_DIM].set(br)

    # bf16 MXU inputs (f32 accumulation inside the kernel)
    a_bf = a_bd.astype(jnp.bfloat16)
    x_bf = x_flat.astype(jnp.bfloat16)
    p_bf = p_bd.astype(jnp.bfloat16)
    w1_bf = w1.astype(jnp.bfloat16)
    w2_bf = w2.astype(jnp.bfloat16)
    wr_bf = wr_pad.astype(jnp.bfloat16)

    logits, kl_term = docnet_forward(a_bf, x_bf, p_bf, w1_bf, b1, w2_bf, b2,
                                     wr_bf, br_pad, OUTPUT_DIM)
    jax.block_until_ready((logits, kl_term))

    assert logits.shape == (D_DOCS * GRAPHS_PER_DOC, OUTPUT_DIM)
    assert kl_term.shape == (1,)

    # correctness check against a pure-JAX reference with identical casts
    ref = reference_forward(a_bf, x_bf, p_bf, w1_bf, b1, w2_bf, b2, wr_bf, br_pad)
    ref = ref[:, :OUTPUT_DIM]
    max_err = float(jnp.max(jnp.abs(logits - ref)))
    assert max_err < 1e-2, f"max_err={max_err}"

    print("KERNEL_OK")
</pallas_src>

<mosaic_0001>
module attributes {stable_mosaic.version = 11 : i64} {
  func.func @docnet_kernel(%arg0: i32, %arg1: memref<128x128xbf16, #tpu.memory_space<vmem>>, %arg2: memref<128x32xbf16, #tpu.memory_space<vmem>>, %arg3: memref<16x128xbf16, #tpu.memory_space<vmem>>, %arg4: memref<32x32xbf16, #tpu.memory_space<vmem>>, %arg5: memref<1x32xf32, #tpu.memory_space<vmem>>, %arg6: memref<32x32xbf16, #tpu.memory_space<vmem>>, %arg7: memref<1x32xf32, #tpu.memory_space<vmem>>, %arg8: memref<32x128xbf16, #tpu.memory_space<vmem>>, %arg9: memref<1x128xf32, #tpu.memory_space<vmem>>, %arg10: memref<16x128xf32, #tpu.memory_space<vmem>>) attributes {dimension_semantics = [#tpu.dimension_semantics<arbitrary>], iteration_bounds = array<i64: 1>, scalar_prefetch = 0 : i64, scratch_operands = 0 : i64, tpu.core_type = #tpu.core_type<tc>, window_params = [{pipeline_mode = #tpu.pipeline_mode<synchronous>, transform_indices = @transform_0, window_bounds = array<i64: 128, 128>}, {pipeline_mode = #tpu.pipeline_mode<synchronous>, transform_indices = @transform_1, window_bounds = array<i64: 128, 32>}, {pipeline_mode = #tpu.pipeline_mode<synchronous>, transform_indices = @transform_2, window_bounds = array<i64: 16, 128>}, {pipeline_mode = #tpu.pipeline_mode<synchronous>, transform_indices = @transform_3, window_bounds = array<i64: 32, 32>}, {pipeline_mode = #tpu.pipeline_mode<synchronous>, transform_indices = @transform_4, window_bounds = array<i64: 1, 32>}, {pipeline_mode = #tpu.pipeline_mode<synchronous>, transform_indices = @transform_5, window_bounds = array<i64: 32, 32>}, {pipeline_mode = #tpu.pipeline_mode<synchronous>, transform_indices = @transform_6, window_bounds = array<i64: 1, 32>}, {pipeline_mode = #tpu.pipeline_mode<synchronous>, transform_indices = @transform_7, window_bounds = array<i64: 32, 128>}, {pipeline_mode = #tpu.pipeline_mode<synchronous>, transform_indices = @transform_8, window_bounds = array<i64: 1, 128>}, {pipeline_mode = #tpu.pipeline_mode<synchronous>, transform_indices = @transform_9, window_bounds = array<i64: 16, 128>}]} {
    %c0 = arith.constant 0 : index
    %c0_0 = arith.constant 0 : index
    %0 = vector.load %arg1[%c0, %c0_0] : memref<128x128xbf16, #tpu.memory_space<vmem>>, vector<128x128xbf16>
    %c0_1 = arith.constant 0 : index
    %c0_2 = arith.constant 0 : index
    %1 = vector.load %arg2[%c0_1, %c0_2] : memref<128x32xbf16, #tpu.memory_space<vmem>>, vector<128x32xbf16>
    %cst = arith.constant dense<0.000000e+00> : vector<128x32xf32>
    %2 = tpu.matmul %0, %1, %cst {dimension_numbers = #tpu.dot_dimension_numbers<[1], [0], [0], [1], [0, 0, 1, 1], [], []>} : vector<128x128xbf16>, vector<128x32xbf16>, vector<128x32xf32> -> vector<128x32xf32>
    %3 = arith.truncf %2 : vector<128x32xf32> to vector<128x32xbf16>
    %c0_3 = arith.constant 0 : index
    %c0_4 = arith.constant 0 : index
    %4 = vector.load %arg4[%c0_3, %c0_4] : memref<32x32xbf16, #tpu.memory_space<vmem>>, vector<32x32xbf16>
    %cst_5 = arith.constant dense<0.000000e+00> : vector<128x32xf32>
    %5 = tpu.matmul %3, %4, %cst_5 {dimension_numbers = #tpu.dot_dimension_numbers<[1], [0], [0], [1], [0, 0, 1, 1], [], []>} : vector<128x32xbf16>, vector<32x32xbf16>, vector<128x32xf32> -> vector<128x32xf32>
    %c0_6 = arith.constant 0 : index
    %c0_7 = arith.constant 0 : index
    %6 = vector.load %arg5[%c0_6, %c0_7] : memref<1x32xf32, #tpu.memory_space<vmem>>, vector<1x32xf32>
    %7 = vector.broadcast %6 : vector<1x32xf32> to vector<128x32xf32>
    %8 = arith.addf %5, %7 : vector<128x32xf32>
    %cst_8 = arith.constant 0.000000e+00 : f32
    %9 = vector.broadcast %cst_8 : f32 to vector<128x32xf32>
    %10 = arith.maximumf %8, %9 : vector<128x32xf32>
    %11 = arith.truncf %10 : vector<128x32xf32> to vector<128x32xbf16>
    %cst_9 = arith.constant dense<0.000000e+00> : vector<128x32xf32>
    %12 = tpu.matmul %0, %11, %cst_9 {dimension_numbers = #tpu.dot_dimension_numbers<[1], [0], [0], [1], [0, 0, 1, 1], [], []>} : vector<128x128xbf16>, vector<128x32xbf16>, vector<128x32xf32> -> vector<128x32xf32>
    %13 = arith.truncf %12 : vector<128x32xf32> to vector<128x32xbf16>
    %c0_10 = arith.constant 0 : index
    %c0_11 = arith.constant 0 : index
    %14 = vector.load %arg6[%c0_10, %c0_11] : memref<32x32xbf16, #tpu.memory_space<vmem>>, vector<32x32xbf16>
    %cst_12 = arith.constant dense<0.000000e+00> : vector<128x32xf32>
    %15 = tpu.matmul %13, %14, %cst_12 {dimension_numbers = #tpu.dot_dimension_numbers<[1], [0], [0], [1], [0, 0, 1, 1], [], []>} : vector<128x32xbf16>, vector<32x32xbf16>, vector<128x32xf32> -> vector<128x32xf32>
    %c0_13 = arith.constant 0 : index
    %c0_14 = arith.constant 0 : index
    %16 = vector.load %arg7[%c0_13, %c0_14] : memref<1x32xf32, #tpu.memory_space<vmem>>, vector<1x32xf32>
    %17 = vector.broadcast %16 : vector<1x32xf32> to vector<128x32xf32>
    %18 = arith.addf %15, %17 : vector<128x32xf32>
    %cst_15 = arith.constant 0.000000e+00 : f32
    %19 = vector.broadcast %cst_15 : f32 to vector<128x32xf32>
    %20 = arith.maximumf %18, %19 : vector<128x32xf32>
    %21 = arith.truncf %20 : vector<128x32xf32> to vector<128x32xbf16>
    %c0_16 = arith.constant 0 : index
    %c0_17 = arith.constant 0 : index
    %22 = vector.load %arg3[%c0_16, %c0_17] : memref<16x128xbf16, #tpu.memory_space<vmem>>, vector<16x128xbf16>
    %cst_18 = arith.constant dense<0.000000e+00> : vector<16x32xf32>
    %23 = tpu.matmul %22, %21, %cst_18 {dimension_numbers = #tpu.dot_dimension_numbers<[1], [0], [0], [1], [0, 0, 1, 1], [], []>} : vector<16x128xbf16>, vector<128x32xbf16>, vector<16x32xf32> -> vector<16x32xf32>
    %24 = arith.truncf %23 : vector<16x32xf32> to vector<16x32xbf16>
    %c0_19 = arith.constant 0 : index
    %c0_20 = arith.constant 0 : index
    %25 = vector.load %arg8[%c0_19, %c0_20] : memref<32x128xbf16, #tpu.memory_space<vmem>>, vector<32x128xbf16>
    %cst_21 = arith.constant dense<0.000000e+00> : vector<16x128xf32>
    %26 = tpu.matmul %24, %25, %cst_21 {dimension_numbers = #tpu.dot_dimension_numbers<[1], [0], [0], [1], [0, 0, 1, 1], [], []>} : vector<16x32xbf16>, vector<32x128xbf16>, vector<16x128xf32> -> vector<16x128xf32>
    %c0_22 = arith.constant 0 : index
    %c0_23 = arith.constant 0 : index
    %27 = vector.load %arg9[%c0_22, %c0_23] : memref<1x128xf32, #tpu.memory_space<vmem>>, vector<1x128xf32>
    %28 = vector.broadcast %27 : vector<1x128xf32> to vector<16x128xf32>
    %29 = arith.addf %26, %28 : vector<16x128xf32>
    %c0_24 = arith.constant 0 : index
    %c0_25 = arith.constant 0 : index
    %30 = vector.load %arg10[%c0_24, %c0_25] : memref<16x128xf32, #tpu.memory_space<vmem>>, vector<16x128xf32>
    tpu.vector_store %arg10[%c0_24, %c0_25], %29 {strides = array<i32>} : memref<16x128xf32, #tpu.memory_space<vmem>>, vector<16x128xf32>,
    return
  }
  func.func @transform_0(%arg0: i32) -> (i32, i32) {
    %c0_i32 = arith.constant 0 : i32
    %c0_i32_0 = arith.constant 0 : i32
    %c0_i32_1 = arith.constant 0 : i32
    return %c0_i32, %c0_i32_0 : i32, i32
  }
  func.func @transform_1(%arg0: i32) -> (i32, i32) {
    %c0_i32 = arith.constant 0 : i32
    %c0_i32_0 = arith.constant 0 : i32
    %c0_i32_1 = arith.constant 0 : i32
    return %c0_i32, %c0_i32_0 : i32, i32
  }
  func.func @transform_2(%arg0: i32) -> (i32, i32) {
    %c0_i32 = arith.constant 0 : i32
    %c0_i32_0 = arith.constant 0 : i32
    %c0_i32_1 = arith.constant 0 : i32
    return %c0_i32, %c0_i32_0 : i32, i32
  }
  func.func @transform_3(%arg0: i32) -> (i32, i32) {
    %c0_i32 = arith.constant 0 : i32
    %c0_i32_0 = arith.constant 0 : i32
    %c0_i32_1 = arith.constant 0 : i32
    return %c0_i32, %c0_i32_0 : i32, i32
  }
  func.func @transform_4(%arg0: i32) -> (i32, i32) {
    %c0_i32 = arith.constant 0 : i32
    %c0_i32_0 = arith.constant 0 : i32
    %c0_i32_1 = arith.constant 0 : i32
    return %c0_i32, %c0_i32_0 : i32, i32
  }
  func.func @transform_5(%arg0: i32) -> (i32, i32) {
    %c0_i32 = arith.constant 0 : i32
    %c0_i32_0 = arith.constant 0 : i32
    %c0_i32_1 = arith.constant 0 : i32
    return %c0_i32, %c0_i32_0 : i32, i32
  }
  func.func @transform_6(%arg0: i32) -> (i32, i32) {
    %c0_i32 = arith.constant 0 : i32
    %c0_i32_0 = arith.constant 0 : i32
    %c0_i32_1 = arith.constant 0 : i32
    return %c0_i32, %c0_i32_0 : i32, i32
  }
  func.func @transform_7(%arg0: i32) -> (i32, i32) {
    %c0_i32 = arith.constant 0 : i32
    %c0_i32_0 = arith.constant 0 : i32
    %c0_i32_1 = arith.constant 0 : i32
    return %c0_i32, %c0_i32_0 : i32, i32
  }
  func.func @transform_8(%arg0: i32) -> (i32, i32) {
    %c0_i32 = arith.constant 0 : i32
    %c0_i32_0 = arith.constant 0 : i32
    %c0_i32_1 = arith.constant 0 : i32
    return %c0_i32, %c0_i32_0 : i32, i32
  }
  func.func @transform_9(%arg0: i32) -> (i32, i32) {
    %c0_i32 = arith.constant 0 : i32
    %c0_i32_0 = arith.constant 0 : i32
    %c0_i32_1 = arith.constant 0 : i32
    return %c0_i32, %c0_i32_0 : i32, i32
  }
}

</mosaic_0001>

<llo_original>
// kernel: tpu_custom_call.1
$region0: #{tpu_custom_call.1}
  #allocation0 [shape = 'u32[]', space=smem, size = 0x4, offset = 0x4, fixed_abs, tag = 'smem constant byte address 0x4 - core index']
  #allocation1 [shape = 'u32[72,128]{1,0:T(1,128)}', space=vmem, size = 0x9000, scoped, tag = 'internal scratch']
  %s0 = inlined_call_operand.vmem [shape: bf16[128,128], index: 0, kind: input, shape index: {}]
  %s1 = inlined_call_operand.vmem [shape: bf16[128,32], index: 1, kind: input, shape index: {}]
  %s2 = inlined_call_operand.hbm [shape: bf16[16,128], index: 2, kind: input, shape index: {}]
  %s3 = inlined_call_operand.vmem [shape: bf16[32,32], index: 3, kind: input, shape index: {}]
  %s4 = inlined_call_operand.vmem [shape: f32[1,32], index: 4, kind: input, shape index: {}]
  %s5 = inlined_call_operand.hbm [shape: bf16[32,32], index: 5, kind: input, shape index: {}]
  %s6 = inlined_call_operand.vmem [shape: f32[1,32], index: 6, kind: input, shape index: {}]
  %s7 = inlined_call_operand.hbm [shape: bf16[32,128], index: 7, kind: input, shape index: {}]
  %s8 = inlined_call_operand.vmem [shape: f32[1,128], index: 8, kind: input, shape index: {}]
  %s9 = inlined_call_operand.hbm [shape: f32[16,128], index: 9, kind: output, shape index: {}]
  %s10 = sld [smem:[#allocation0]]
  $region58: #{tpu_custom_call.1} parent=0
    _
  %s12 = ssub.s32 1, %s10
  %s13 = scalar_select 0, %s12, %s10
  $region1: #{tpu_custom_call.1} parent=0
    #allocation2 [shape = 'u8[4096]{0}', space=vmem, size = 0x1000, scoped, tag = 'input window, operand 2, single buffered']
    #allocation3 [shape = 's32[1]{0}', space=sflag, size = 0x4, scoped, tag = 'scoped memory for tpu_custom_call.1']
    #allocation4 [shape = 's32[1]{0}', space=sflag, size = 0x4, scoped, tag = 'scoped memory for tpu_custom_call.1']
    #allocation5 [shape = 'u8[8192]{0}', space=vmem, size = 0x2000, scoped, tag = 'input window, operand 5, single buffered']
    #allocation6 [shape = 's32[1]{0}', space=sflag, size = 0x4, scoped, tag = 'scoped memory for tpu_custom_call.1']
    #allocation7 [shape = 'u8[8192]{0}', space=vmem, size = 0x2000, scoped, tag = 'input window, operand 7, single buffered']
    #allocation8 [shape = 'u8[8192]{0}', space=vmem, size = 0x2000, scoped, tag = 'output window, operand 0, single buffered']
    %14 = vsyncpa [#allocation3], 0
    %15 = vsyncpa [#allocation6], 0
    %16 = vsyncpa [#allocation4], 0
    // Predicated region
    $region2: #{tpu_custom_call.1} parent=1 // pred_check
      _
    $region3: #{tpu_custom_call.1} parent=1 // pred_check_branch
      %18 = sbr.rel (0) target = $region5
    $region4: #{tpu_custom_call.1} parent=1 // pred_region
      _
    $region5: #{tpu_custom_call.1} parent=1 // pred_fallthru
      _
    // Predicated region
    $region6: #{tpu_custom_call.1} parent=1 // pred_check
      _
    $region7: #{tpu_custom_call.1} parent=1 // pred_check_branch
      %20 = sbr.rel (0) target = $region9
    $region8: #{tpu_custom_call.1} parent=1 // pred_region
      _
    $region9: #{tpu_custom_call.1} parent=1 // pred_fallthru
      _
    // Predicated region
    $region10: #{tpu_custom_call.1} parent=1 // pred_check
      _
    $region11: #{tpu_custom_call.1} parent=1 // pred_check_branch
      %22 = sbr.rel (0) target = $region13
    $region12: #{tpu_custom_call.1} parent=1 // pred_region
      %24 = vsyncadd [#allocation3], 0
      %s25 = sshll.u32 %s2, 4
      %s26 = int_to_ptr.hbm [resolvable:$true] %s25
      %s27 = sshll.u32 [#allocation2], 4
      %s28 = int_to_ptr.vmem [resolvable:$true] %s27
      %33 = dma.hbm_to_vmem [thread:$0]  %s26, 128, %s28, [#allocation3], 64, 64, 4
    $region13: #{tpu_custom_call.1} parent=1 // pred_fallthru
      _
    // Predicated region
    $region14: #{tpu_custom_call.1} parent=1 // pred_check
      _
    $region15: #{tpu_custom_call.1} parent=1 // pred_check_branch
      %35 = sbr.rel (0) target = $region17
    $region16: #{tpu_custom_call.1} parent=1 // pred_region
      _
    $region17: #{tpu_custom_call.1} parent=1 // pred_fallthru
      _
    // Predicated region
    $region18: #{tpu_custom_call.1} parent=1 // pred_check
      _
    $region19: #{tpu_custom_call.1} parent=1 // pred_check_branch
      %37 = sbr.rel (0) target = $region21
    $region20: #{tpu_custom_call.1} parent=1 // pred_region
      _
    $region21: #{tpu_custom_call.1} parent=1 // pred_fallthru
      _
    // Predicated region
    $region22: #{tpu_custom_call.1} parent=1 // pred_check
      _
    $region23: #{tpu_custom_call.1} parent=1 // pred_check_branch
      %39 = sbr.rel (0) target = $region25
    $region24: #{tpu_custom_call.1} parent=1 // pred_region
      %41 = vsyncadd [#allocation6], 0
      %s42 = sshll.u32 %s5, 4
      %s43 = int_to_ptr.hbm [resolvable:$true] %s42
      %s44 = sshll.u32 [#allocation5], 4
      %s45 = int_to_ptr.vmem [resolvable:$true] %s44
      %50 = dma.hbm_to_vmem [thread:$0]  %s43, 256, %s45, [#allocation6], 64, 64, 4
    $region25: #{tpu_custom_call.1} parent=1 // pred_fallthru
      _
    // Predicated region
    $region26: #{tpu_custom_call.1} parent=1 // pred_check
      _
    $region27: #{tpu_custom_call.1} parent=1 // pred_check_branch
      %52 = sbr.rel (0) target = $region29
    $region28: #{tpu_custom_call.1} parent=1 // pred_region
      _
    $region29: #{tpu_custom_call.1} parent=1 // pred_fallthru
      _
    // Predicated region
    $region30: #{tpu_custom_call.1} parent=1 // pred_check
      _
    $region31: #{tpu_custom_call.1} parent=1 // pred_check_branch
      %54 = sbr.rel (0) target = $region33
    $region32: #{tpu_custom_call.1} parent=1 // pred_region
      %56 = vsyncadd [#allocation6], 0
      %s57 = sshll.u32 %s7, 4
      %s58 = int_to_ptr.hbm [resolvable:$true] %s57
      %s59 = sshll.u32 [#allocation7], 4
      %s60 = int_to_ptr.vmem [resolvable:$true] %s59
      %65 = dma.hbm_to_vmem [thread:$0]  %s58, 256, %s60, [#allocation6], 64, 64, 4
    $region33: #{tpu_custom_call.1} parent=1 // pred_fallthru
      _
    // Predicated region
    $region34: #{tpu_custom_call.1} parent=1 // pred_check
      _
    $region35: #{tpu_custom_call.1} parent=1 // pred_check_branch
      %67 = sbr.rel (0) target = $region37
    $region36: #{tpu_custom_call.1} parent=1 // pred_region
      _
    $region37: #{tpu_custom_call.1} parent=1 // pred_fallthru
      _
    // Predicated region
    $region38: #{tpu_custom_call.1} parent=1 // pred_check
      _
    $region39: #{tpu_custom_call.1} parent=1 // pred_check_branch
      %69 = sbr.rel (0) target = $region41
    $region40: #{tpu_custom_call.1} parent=1 // pred_region
      %71 = dma.done [#allocation3], 128
    $region41: #{tpu_custom_call.1} parent=1 // pred_fallthru
      _
    // Predicated region
    $region42: #{tpu_custom_call.1} parent=1 // pred_check
      _
    $region43: #{tpu_custom_call.1} parent=1 // pred_check_branch
      %73 = sbr.rel (0) target = $region45
    $region44: #{tpu_custom_call.1} parent=1 // pred_region
      %75 = dma.done [#allocation6], 256
    $region45: #{tpu_custom_call.1} parent=1 // pred_fallthru
      _
    // Predicated region
    $region46: #{tpu_custom_call.1} parent=1 // pred_check
      _
    $region47: #{tpu_custom_call.1} parent=1 // pred_check_branch
      %77 = sbr.rel (0) target = $region49
    $region48: #{tpu_custom_call.1} parent=1 // pred_region
      %79 = dma.done [#allocation6], 256
    $region49: #{tpu_custom_call.1} parent=1 // pred_fallthru
      _
    %v81 = vld [vmem:[%s0] sm:$0xf]
    %v82 = vld [vmem:[%s0 + $0x4] sm:$0xf]
    %v83 = vld [vmem:[%s0 + $0x8] sm:$0xf]
    %v84 = vld [vmem:[%s0 + $0xc] sm:$0xf]
    %v85 = vld [vmem:[%s0 + $0x10] sm:$0xf]
    %v86 = vld [vmem:[%s0 + $0x14] sm:$0xf]
    %v87 = vld [vmem:[%s0 + $0x18] sm:$0xf]
    %v88 = vld [vmem:[%s0 + $0x1c] sm:$0xf]
    %v89 = vld [vmem:[%s0 + $0x20] sm:$0xf]
    %v90 = vld [vmem:[%s0 + $0x24] sm:$0xf]
    %v91 = vld [vmem:[%s0 + $0x28] sm:$0xf]
    %v92 = vld [vmem:[%s0 + $0x2c] sm:$0xf]
    %v93 = vld [vmem:[%s0 + $0x30] sm:$0xf]
    %v94 = vld [vmem:[%s0 + $0x34] sm:$0xf]
    %v95 = vld [vmem:[%s0 + $0x38] sm:$0xf]
    %v96 = vld [vmem:[%s0 + $0x3c] sm:$0xf]
    %v97 = vld [vmem:[%s1] sm:$0xf]
    %v98 = vld [vmem:[%s1 + $0x4] sm:$0xf]
    %v99 = vld [vmem:[%s1 + $0x8] sm:$0xf]
    %v100 = vld [vmem:[%s1 + $0xc] sm:$0xf]
    %v101 = vld [vmem:[%s1 + $0x10] sm:$0xf]
    %v102 = vld [vmem:[%s1 + $0x14] sm:$0xf]
    %v103 = vld [vmem:[%s1 + $0x18] sm:$0xf]
    %v104 = vld [vmem:[%s1 + $0x1c] sm:$0xf]
    %v105 = vld [vmem:[%s1 + $0x20] sm:$0xf]
    %v106 = vld [vmem:[%s1 + $0x24] sm:$0xf]
    %v107 = vld [vmem:[%s1 + $0x28] sm:$0xf]
    %v108 = vld [vmem:[%s1 + $0x2c] sm:$0xf]
    %v109 = vld [vmem:[%s1 + $0x30] sm:$0xf]
    %v110 = vld [vmem:[%s1 + $0x34] sm:$0xf]
    %v111 = vld [vmem:[%s1 + $0x38] sm:$0xf]
    %v112 = vld [vmem:[%s1 + $0x3c] sm:$0xf]
    %v129 = vunpack.c.l.b16 %v81
    %v130 = vunpack.c.l.b16 %v82
    %v131 = vunpack.c.l.b16 %v83
    %v132 = vunpack.c.l.b16 %v84
    %v133 = vunpack.c.l.b16 %v85
    %v134 = vunpack.c.l.b16 %v86
    %v135 = vunpack.c.l.b16 %v87
    %v136 = vunpack.c.l.b16 %v88
    %v137 = vunpack.c.l.b16 %v89
    %v138 = vunpack.c.l.b16 %v90
    %v139 = vunpack.c.l.b16 %v91
    %v140 = vunpack.c.l.b16 %v92
    %v141 = vunpack.c.l.b16 %v93
    %v142 = vunpack.c.l.b16 %v94
    %v143 = vunpack.c.l.b16 %v95
    %v144 = vunpack.c.l.b16 %v96
    %v145 = vpack.c.b16 %v130, %v129
    %v146 = vpack.c.b16 %v132, %v131
    %v147 = vpack.c.b16 %v134, %v133
    %v148 = vpack.c.b16 %v136, %v135
    %v149 = vpack.c.b16 %v138, %v137
    %v150 = vpack.c.b16 %v140, %v139
    %v151 = vpack.c.b16 %v142, %v141
    %v152 = vpack.c.b16 %v144, %v143
    %v177 = vunpack.c.l.b16 %v97
    %v178 = vunpack.c.l.b16 %v98
    %v179 = vunpack.c.l.b16 %v99
    %v180 = vunpack.c.l.b16 %v100
    %v181 = vunpack.c.l.b16 %v101
    %v182 = vunpack.c.l.b16 %v102
    %v183 = vunpack.c.l.b16 %v103
    %v184 = vunpack.c.l.b16 %v104
    %v185 = vunpack.c.l.b16 %v105
    %v186 = vunpack.c.l.b16 %v106
    %v187 = vunpack.c.l.b16 %v107
    %v188 = vunpack.c.l.b16 %v108
    %v189 = vunpack.c.l.b16 %v109
    %v190 = vunpack.c.l.b16 %v110
    %v191 = vunpack.c.l.b16 %v111
    %v192 = vunpack.c.l.b16 %v112
    %v193 = vpack.c.b16 %v178, %v177
    %v194 = vpack.c.b16 %v180, %v179
    %v195 = vpack.c.b16 %v182, %v181
    %v196 = vpack.c.b16 %v184, %v183
    %v197 = vpack.c.b16 %v186, %v185
    %v198 = vpack.c.b16 %v188, %v187
    %v199 = vpack.c.b16 %v190, %v189
    %v200 = vpack.c.b16 %v192, %v191
    %209 = vmatpush.bf16.msra.mxu0 %v200
    %210 = vmatpush.bf16.msra.mxu0 %v199
    %211 = vmatpush.bf16.msra.mxu0 %v198
    %212 = vmatpush.bf16.msra.mxu0 %v197
    %213 = vmatpush.bf16.msra.mxu0 %v196
    %214 = vmatpush.bf16.msra.mxu0 %v195
    %215 = vmatpush.bf16.msra.mxu0 %v194
    %216 = vmatpush.bf16.msra.mxu0 %v193
    %217 = vmatmul.bf16.gmra.mxu0 %v145
    %v218 = vpop.f32.mrf.mxu0
    %v219 = vadd.f32 0.0, %v218
    %v220 = vpop.f32.mrf.mxu0
    %v221 = vadd.f32 0.0, %v220
    %222 = vmatmul.bf16.gmra.mxu0 %v146
    %v223 = vpop.f32.mrf.mxu0
    %v224 = vadd.f32 0.0, %v223
    %v225 = vpop.f32.mrf.mxu0
    %v226 = vadd.f32 0.0, %v225
    %227 = vmatmul.bf16.gmra.mxu0 %v147
    %v228 = vpop.f32.mrf.mxu0
    %v229 = vadd.f32 0.0, %v228
    %v230 = vpop.f32.mrf.mxu0
    %v231 = vadd.f32 0.0, %v230
    %232 = vmatmul.bf16.gmra.mxu0 %v148
    %v233 = vpop.f32.mrf.mxu0
    %v234 = vadd.f32 0.0, %v233
    %v235 = vpop.f32.mrf.mxu0
    %v236 = vadd.f32 0.0, %v235
    %237 = vmatmul.bf16.gmra.mxu0 %v149
    %v238 = vpop.f32.mrf.mxu0
    %v239 = vadd.f32 0.0, %v238
    %v240 = vpop.f32.mrf.mxu0
    %v241 = vadd.f32 0.0, %v240
    %242 = vmatmul.bf16.gmra.mxu0 %v150
    %v243 = vpop.f32.mrf.mxu0
    %v244 = vadd.f32 0.0, %v243
    %v245 = vpop.f32.mrf.mxu0
    %v246 = vadd.f32 0.0, %v245
    %247 = vmatmul.bf16.gmra.mxu0 %v151
    %v248 = vpop.f32.mrf.mxu0
    %v249 = vadd.f32 0.0, %v248
    %v250 = vpop.f32.mrf.mxu0
    %v251 = vadd.f32 0.0, %v250
    %252 = vmatmul.bf16.gmra.mxu0 %v152
    %v253 = vpop.f32.mrf.mxu0
    %v254 = vadd.f32 0.0, %v253
    %v255 = vpop.f32.mrf.mxu0
    %v256 = vadd.f32 0.0, %v255
    %257 = vdwg.mxu0
    %v258 = vpack.c.bf16 %v221, %v219
    %v259 = vpack.c.bf16 %v226, %v224
    %v260 = vpack.c.bf16 %v231, %v229
    %v261 = vpack.c.bf16 %v236, %v234
    %v262 = vpack.c.bf16 %v241, %v239
    %v263 = vpack.c.bf16 %v246, %v244
    %v264 = vpack.c.bf16 %v251, %v249
    %v265 = vpack.c.bf16 %v256, %v254
    %v266 = vld [vmem:[%s3] sm:$0xf]
    %v267 = vld [vmem:[%s3 + $0x4] sm:$0xf]
    %v268 = vld [vmem:[%s3 + $0x8] sm:$0xf]
    %v269 = vld [vmem:[%s3 + $0xc] sm:$0xf]
    %v270 = vld [vmem:[%s4] sm:$0x1]
    %v272 = vperm.slane %v270, 0
    %v278 = vunpack.c.l.b16 %v266
    %v279 = vunpack.c.l.b16 %v267
    %v280 = vunpack.c.l.b16 %v268
    %v281 = vunpack.c.l.b16 %v269
    %v282 = vpack.c.b16 %v279, %v278
    %v283 = vpack.c.b16 %v281, %v280
    %vm286 = vcmask 261120
    %v288 = vsel %vm286, %v258, 0
    %v291 = vsel %vm286, %v259, 0
    %v294 = vsel %vm286, %v260, 0
    %v297 = vsel %vm286, %v261, 0
    %v300 = vsel %vm286, %v262, 0
    %v303 = vsel %vm286, %v263, 0
    %v306 = vsel %vm286, %v264, 0
    %v309 = vsel %vm286, %v265, 0
    %311 = vmatpush.bf16.msra.mxu0 0
    %312 = vmatpush.bf16.msra.mxu0 0
    %313 = vmatpush.bf16.msra.mxu0 0
    %314 = vmatpush.bf16.msra.mxu0 0
    %315 = vmatpush.bf16.msra.mxu0 0
    %316 = vmatpush.bf16.msra.mxu0 0
    %317 = vmatpush.bf16.msra.mxu0 %v283
    %318 = vmatpush.bf16.msra.mxu0 %v282
    %319 = vmatmul.bf16.gmra.mxu0 %v288
    %v320 = vpop.f32.mrf.mxu0
    %v321 = vadd.f32 %v272, %v320
    %v322 = vpop.f32.mrf.mxu0
    %v323 = vadd.f32 %v272, %v322
    %324 = vmatmul.bf16.gmra.mxu0 %v291
    %v325 = vpop.f32.mrf.mxu0
    %v326 = vadd.f32 %v272, %v325
    %v327 = vpop.f32.mrf.mxu0
    %v328 = vadd.f32 %v272, %v327
    %329 = vmatmul.bf16.gmra.mxu0 %v294
    %v330 = vpop.f32.mrf.mxu0
    %v331 = vadd.f32 %v272, %v330
    %v332 = vpop.f32.mrf.mxu0
    %v333 = vadd.f32 %v272, %v332
    %334 = vmatmul.bf16.gmra.mxu0 %v297
    %v335 = vpop.f32.mrf.mxu0
    %v336 = vadd.f32 %v272, %v335
    %v337 = vpop.f32.mrf.mxu0
    %v338 = vadd.f32 %v272, %v337
    %339 = vmatmul.bf16.gmra.mxu0 %v300
    %v340 = vpop.f32.mrf.mxu0
    %v341 = vadd.f32 %v272, %v340
    %v342 = vpop.f32.mrf.mxu0
    %v343 = vadd.f32 %v272, %v342
    %344 = vmatmul.bf16.gmra.mxu0 %v303
    %v345 = vpop.f32.mrf.mxu0
    %v346 = vadd.f32 %v272, %v345
    %v347 = vpop.f32.mrf.mxu0
    %v348 = vadd.f32 %v272, %v347
    %349 = vmatmul.bf16.gmra.mxu0 %v306
    %v350 = vpop.f32.mrf.mxu0
    %v351 = vadd.f32 %v272, %v350
    %v352 = vpop.f32.mrf.mxu0
    %v353 = vadd.f32 %v272, %v352
    %354 = vmatmul.bf16.gmra.mxu0 %v309
    %v355 = vpop.f32.mrf.mxu0
    %v356 = vadd.f32 %v272, %v355
    %v357 = vpop.f32.mrf.mxu0
    %v358 = vadd.f32 %v272, %v357
    %359 = vdwg.mxu0
    %v360 = vmax.f32 %v321, 0.0
    %v361 = vmax.f32 %v323, 0.0
    %v362 = vmax.f32 %v326, 0.0
    %v363 = vmax.f32 %v328, 0.0
    %v364 = vmax.f32 %v331, 0.0
    %v365 = vmax.f32 %v333, 0.0
    %v366 = vmax.f32 %v336, 0.0
    %v367 = vmax.f32 %v338, 0.0
    %v368 = vmax.f32 %v341, 0.0
    %v369 = vmax.f32 %v343, 0.0
    %v370 = vmax.f32 %v346, 0.0
    %v371 = vmax.f32 %v348, 0.0
    %v372 = vmax.f32 %v351, 0.0
    %v373 = vmax.f32 %v353, 0.0
    %v374 = vmax.f32 %v356, 0.0
    %v375 = vmax.f32 %v358, 0.0
    %v376 = vpack.c.bf16 %v361, %v360
    %v377 = vpack.c.bf16 %v363, %v362
    %v378 = vpack.c.bf16 %v365, %v364
    %v379 = vpack.c.bf16 %v367, %v366
    %v380 = vpack.c.bf16 %v369, %v368
    %v381 = vpack.c.bf16 %v371, %v370
    %v382 = vpack.c.bf16 %v373, %v372
    %v383 = vpack.c.bf16 %v375, %v374
    %384 = vmatpush.bf16.msra.mxu0 %v383
    %385 = vmatpush.bf16.msra.mxu0 %v382
    %386 = vmatpush.bf16.msra.mxu0 %v381
    %387 = vmatpush.bf16.msra.mxu0 %v380
    %388 = vmatpush.bf16.msra.mxu0 %v379
    %389 = vmatpush.bf16.msra.mxu0 %v378
    %390 = vmatpush.bf16.msra.mxu0 %v377
    %391 = vmatpush.bf16.msra.mxu0 %v376
    %392 = vmatmul.bf16.gmra.mxu0 %v145
    %v393 = vpop.f32.mrf.mxu0
    %v394 = vadd.f32 0.0, %v393
    %v395 = vpop.f32.mrf.mxu0
    %v396 = vadd.f32 0.0, %v395
    %397 = vmatmul.bf16.gmra.mxu0 %v146
    %v398 = vpop.f32.mrf.mxu0
    %v399 = vadd.f32 0.0, %v398
    %v400 = vpop.f32.mrf.mxu0
    %v401 = vadd.f32 0.0, %v400
    %402 = vmatmul.bf16.gmra.mxu0 %v147
    %v403 = vpop.f32.mrf.mxu0
    %v404 = vadd.f32 0.0, %v403
    %v405 = vpop.f32.mrf.mxu0
    %v406 = vadd.f32 0.0, %v405
    %407 = vmatmul.bf16.gmra.mxu0 %v148
    %v408 = vpop.f32.mrf.mxu0
    %v409 = vadd.f32 0.0, %v408
    %v410 = vpop.f32.mrf.mxu0
    %v411 = vadd.f32 0.0, %v410
    %412 = vmatmul.bf16.gmra.mxu0 %v149
    %v413 = vpop.f32.mrf.mxu0
    %v414 = vadd.f32 0.0, %v413
    %v415 = vpop.f32.mrf.mxu0
    %v416 = vadd.f32 0.0, %v415
    %417 = vmatmul.bf16.gmra.mxu0 %v150
    %v418 = vpop.f32.mrf.mxu0
    %v419 = vadd.f32 0.0, %v418
    %v420 = vpop.f32.mrf.mxu0
    %v421 = vadd.f32 0.0, %v420
    %422 = vmatmul.bf16.gmra.mxu0 %v151
    %v423 = vpop.f32.mrf.mxu0
    %v424 = vadd.f32 0.0, %v423
    %v425 = vpop.f32.mrf.mxu0
    %v426 = vadd.f32 0.0, %v425
    %427 = vmatmul.bf16.gmra.mxu0 %v152
    %v428 = vpop.f32.mrf.mxu0
    %v429 = vadd.f32 0.0, %v428
    %v430 = vpop.f32.mrf.mxu0
    %v431 = vadd.f32 0.0, %v430
    %432 = vdwg.mxu0
    %v433 = vpack.c.bf16 %v396, %v394
    %v434 = vpack.c.bf16 %v401, %v399
    %v435 = vpack.c.bf16 %v406, %v404
    %v436 = vpack.c.bf16 %v411, %v409
    %v437 = vpack.c.bf16 %v416, %v414
    %v438 = vpack.c.bf16 %v421, %v419
    %v439 = vpack.c.bf16 %v426, %v424
    %v440 = vpack.c.bf16 %v431, %v429
    %v441 = vld [vmem:[#allocation5] sm:$0xf]
    %v442 = vld [vmem:[#allocation5 + $0x4] sm:$0xf]
    %v443 = vld [vmem:[#allocation5 + $0x8] sm:$0xf]
    %v444 = vld [vmem:[#allocation5 + $0xc] sm:$0xf]
    %v445 = vld [vmem:[%s6] sm:$0x1]
    %v447 = vperm.slane %v445, 0
    %v453 = vunpack.c.l.b16 %v441
    %v454 = vunpack.c.l.b16 %v442
    %v455 = vunpack.c.l.b16 %v443
    %v456 = vunpack.c.l.b16 %v444
    %v457 = vpack.c.b16 %v454, %v453
    %v458 = vpack.c.b16 %v456, %v455
    %v462 = vsel %vm286, %v433, 0
    %v465 = vsel %vm286, %v434, 0
    %v468 = vsel %vm286, %v435, 0
    %v471 = vsel %vm286, %v436, 0
    %v474 = vsel %vm286, %v437, 0
    %v477 = vsel %vm286, %v438, 0
    %v480 = vsel %vm286, %v439, 0
    %v483 = vsel %vm286, %v440, 0
    %485 = vmatpush.bf16.msra.mxu0 0
    %486 = vmatpush.bf16.msra.mxu0 0
    %487 = vmatpush.bf16.msra.mxu0 0
    %488 = vmatpush.bf16.msra.mxu0 0
    %489 = vmatpush.bf16.msra.mxu0 0
    %490 = vmatpush.bf16.msra.mxu0 0
    %491 = vmatpush.bf16.msra.mxu0 %v458
    %492 = vmatpush.bf16.msra.mxu0 %v457
    %493 = vmatmul.bf16.gmra.mxu0 %v462
    %v494 = vpop.f32.mrf.mxu0
    %v495 = vadd.f32 %v447, %v494
    %v496 = vpop.f32.mrf.mxu0
    %v497 = vadd.f32 %v447, %v496
    %498 = vmatmul.bf16.gmra.mxu0 %v465
    %v499 = vpop.f32.mrf.mxu0
    %v500 = vadd.f32 %v447, %v499
    %v501 = vpop.f32.mrf.mxu0
    %v502 = vadd.f32 %v447, %v501
    %503 = vmatmul.bf16.gmra.mxu0 %v468
    %v504 = vpop.f32.mrf.mxu0
    %v505 = vadd.f32 %v447, %v504
    %v506 = vpop.f32.mrf.mxu0
    %v507 = vadd.f32 %v447, %v506
    %508 = vmatmul.bf16.gmra.mxu0 %v471
    %v509 = vpop.f32.mrf.mxu0
    %v510 = vadd.f32 %v447, %v509
    %v511 = vpop.f32.mrf.mxu0
    %v512 = vadd.f32 %v447, %v511
    %513 = vmatmul.bf16.gmra.mxu0 %v474
    %v514 = vpop.f32.mrf.mxu0
    %v515 = vadd.f32 %v447, %v514
    %v516 = vpop.f32.mrf.mxu0
    %v517 = vadd.f32 %v447, %v516
    %518 = vmatmul.bf16.gmra.mxu0 %v477
    %v519 = vpop.f32.mrf.mxu0
    %v520 = vadd.f32 %v447, %v519
    %v521 = vpop.f32.mrf.mxu0
    %v522 = vadd.f32 %v447, %v521
    %523 = vmatmul.bf16.gmra.mxu0 %v480
    %v524 = vpop.f32.mrf.mxu0
    %v525 = vadd.f32 %v447, %v524
    %v526 = vpop.f32.mrf.mxu0
    %v527 = vadd.f32 %v447, %v526
    %528 = vmatmul.bf16.gmra.mxu0 %v483
    %v529 = vpop.f32.mrf.mxu0
    %v530 = vadd.f32 %v447, %v529
    %v531 = vpop.f32.mrf.mxu0
    %v532 = vadd.f32 %v447, %v531
    %533 = vdwg.mxu0
    %v534 = vmax.f32 %v495, 0.0
    %v535 = vmax.f32 %v497, 0.0
    %v536 = vmax.f32 %v500, 0.0
    %v537 = vmax.f32 %v502, 0.0
    %v538 = vmax.f32 %v505, 0.0
    %v539 = vmax.f32 %v507, 0.0
    %v540 = vmax.f32 %v510, 0.0
    %v541 = vmax.f32 %v512, 0.0
    %v542 = vmax.f32 %v515, 0.0
    %v543 = vmax.f32 %v517, 0.0
    %v544 = vmax.f32 %v520, 0.0
    %v545 = vmax.f32 %v522, 0.0
    %v546 = vmax.f32 %v525, 0.0
    %v547 = vmax.f32 %v527, 0.0
    %v548 = vmax.f32 %v530, 0.0
    %v549 = vmax.f32 %v532, 0.0
    %v550 = vpack.c.bf16 %v535, %v534
    %v551 = vpack.c.bf16 %v537, %v536
    %v552 = vpack.c.bf16 %v539, %v538
    %v553 = vpack.c.bf16 %v541, %v540
    %v554 = vpack.c.bf16 %v543, %v542
    %v555 = vpack.c.bf16 %v545, %v544
    %v556 = vpack.c.bf16 %v547, %v546
    %v557 = vpack.c.bf16 %v549, %v548
    %v558 = vld [vmem:[#allocation2] sm:$0xf]
    %v559 = vld [vmem:[#allocation2 + $0x4] sm:$0xf]
    %v562 = vunpack.c.l.b16 %v558
    %v563 = vunpack.c.l.b16 %v559
    %v564 = vpack.c.b16 %v563, %v562
    %566 = vmatpush.bf16.msra.mxu0 %v557
    %567 = vmatpush.bf16.msra.mxu0 %v556
    %568 = vmatpush.bf16.msra.mxu0 %v555
    %569 = vmatpush.bf16.msra.mxu0 %v554
    %570 = vmatpush.bf16.msra.mxu0 %v553
    %571 = vmatpush.bf16.msra.mxu0 %v552
    %572 = vmatpush.bf16.msra.mxu0 %v551
    %573 = vmatpush.bf16.msra.mxu0 %v550
    %574 = vmatmul.bf16.gmra.mxu0 %v564
    %v575 = vpop.f32.mrf.mxu0
    %v576 = vadd.f32 0.0, %v575
    %v577 = vpop.f32.mrf.mxu0
    %v578 = vadd.f32 0.0, %v577
    %579 = vdwg.mxu0
    %v580 = vpack.c.bf16 %v578, %v576
    %v581 = vld [vmem:[#allocation7] sm:$0xf]
    %v582 = vld [vmem:[#allocation7 + $0x4] sm:$0xf]
    %v583 = vld [vmem:[#allocation7 + $0x8] sm:$0xf]
    %v584 = vld [vmem:[#allocation7 + $0xc] sm:$0xf]
    %v585 = vld [vmem:[%s8] sm:$0x1]
    %v587 = vperm.slane %v585, 0
    %v593 = vunpack.c.l.b16 %v581
    %v594 = vunpack.c.l.b16 %v582
    %v595 = vunpack.c.l.b16 %v583
    %v596 = vunpack.c.l.b16 %v584
    %v597 = vpack.c.b16 %v594, %v593
    %v598 = vpack.c.b16 %v596, %v595
    %v602 = vsel %vm286, %v580, 0
    %604 = vmatpush.bf16.msra.mxu0 0
    %605 = vmatpush.bf16.msra.mxu0 0
    %606 = vmatpush.bf16.msra.mxu0 0
    %607 = vmatpush.bf16.msra.mxu0 0
    %608 = vmatpush.bf16.msra.mxu0 0
    %609 = vmatpush.bf16.msra.mxu0 0
    %610 = vmatpush.bf16.msra.mxu0 %v598
    %611 = vmatpush.bf16.msra.mxu0 %v597
    %612 = vmatmul.bf16.gmra.mxu0 %v602
    %v613 = vpop.f32.mrf.mxu0
    %v614 = vadd.f32 %v587, %v613
    %v615 = vpop.f32.mrf.mxu0
    %v616 = vadd.f32 %v587, %v615
    %617 = vdwg.mxu0
    %618 = vst [vmem:[#allocation8] sm:$0xff] %v614
    %619 = vst [vmem:[#allocation8 + $0x8] sm:$0xff] %v616
    // Predicated region
    $region50: #{tpu_custom_call.1} parent=1 // pred_check
      _
    $region51: #{tpu_custom_call.1} parent=1 // pred_check_branch
      %621 = sbr.rel (0) target = $region53
    $region52: #{tpu_custom_call.1} parent=1 // pred_region
      %623 = vsyncadd [#allocation4], 0
      %s624 = sshll.u32 [#allocation8], 4
      %s625 = int_to_ptr.vmem [resolvable:$true] %s624
      %s626 = sshll.u32 %s9, 4
      %s627 = int_to_ptr.hbm [resolvable:$true] %s626
      %632 = dma.vmem_to_hbm [thread:$0]  %s625, 256, %s627, [#allocation4], 128, 128, 8
    $region53: #{tpu_custom_call.1} parent=1 // pred_fallthru
      _
    // Predicated region
    $region54: #{tpu_custom_call.1} parent=1 // pred_check
      _
    $region55: #{tpu_custom_call.1} parent=1 // pred_check_branch
      %634 = sbr.rel (0) target = $region57
    $region56: #{tpu_custom_call.1} parent=1 // pred_region
      %636 = dma.done [#allocation4], 256
    $region57: #{tpu_custom_call.1} parent=1 // pred_fallthru
      _
    %637 = vsyncpa [#allocation3], 1
    %638 = vsyncpa [#allocation6], 1
    %639 = vsyncpa [#allocation4], 1

</llo_original>
